<compile_context>
chip_gen: v5e
topology: v5e:2x2
jax: 0.10.0
libtpu: 0.0.40
codegen_flags: <defaults>
</compile_context>

<pallas_src>
import functools
import math

import jax
import jax.numpy as jnp
from jax.experimental import pallas as pl
from jax.experimental.pallas import tpu as pltpu

# ----------------------------- model sizes ---------------------------------
B = 2            # batch
S = 16           # sequence length
H = 32           # hidden dim
NUM_HEADS = 4
HEAD_DIM = H // NUM_HEADS
MLP_DIM = 64
LN_EPS = 1e-6

# --------------------- packed parameter slab layouts ------------------------
# Weight slab (bf16), shape (W_ROWS, W_COLS) = (96, 384); every matrix starts
# on a 128-lane boundary:
#   rows [0, H)          : wqkv (H, 3H) @ cols [0,96)   (q columns pre-scaled)
#                          wo   (H, H)  @ cols [128,160)
#                          w1   (H, MLP)@ cols [256,320)
#   rows [H, H+MLP_DIM)  : w2 (MLP_DIM, H) @ cols [0, H)
W_COLS = 384
C_QKV = 0
C_WO = 128
C_W1 = 256
W_ROWS = H + MLP_DIM                       # 96 (multiple of 16 for bf16 tiles)

# Vector slab (f32), shape (8, 128); one vector per row starting at lane 0:
R_LN1_S, R_LN1_B, R_LN2_S, R_LN2_B = 0, 1, 2, 3
R_BQKV, R_BO, R_B1, R_B2 = 4, 5, 6, 7
VEC_ROWS, VEC_COLS = 8, 128


def _gelu_tanh(x):
    # flax nn.gelu default (approximate=True, tanh form)
    c = math.sqrt(2.0 / math.pi)
    return 0.5 * x * (1.0 + jnp.tanh(c * (x + 0.044715 * x * x * x)))


def _layernorm(x, scale, bias):
    mu = jnp.mean(x, axis=-1, keepdims=True)
    var = jnp.mean(jnp.square(x - mu), axis=-1, keepdims=True)
    return (x - mu) * jax.lax.rsqrt(var + LN_EPS) * scale + bias


def encoder_block_kernel(x_ref, w_ref, vec_ref, o_ref, *, chunk_b):
    """One grid step: chunk_b full sequences (chunk_b*S rows) of the layer."""
    rows = chunk_b * S
    x = x_ref[...]                                        # (rows, H) f32

    # ---- f32 vector params (LN scales/biases, dense biases) ----
    ln1_s = vec_ref[R_LN1_S:R_LN1_S + 1, 0:H]             # (1, H)
    ln1_b = vec_ref[R_LN1_B:R_LN1_B + 1, 0:H]
    ln2_s = vec_ref[R_LN2_S:R_LN2_S + 1, 0:H]
    ln2_b = vec_ref[R_LN2_B:R_LN2_B + 1, 0:H]
    b_qkv = vec_ref[R_BQKV:R_BQKV + 1, 0:3 * H]           # (1, 3H) q-part pre-scaled
    b_o = vec_ref[R_BO:R_BO + 1, 0:H]
    b_1 = vec_ref[R_B1:R_B1 + 1, 0:MLP_DIM]
    b_2 = vec_ref[R_B2:R_B2 + 1, 0:H]

    # ---- bf16 weights, each read starts on a 128-lane boundary ----
    w_qkv = w_ref[0:H, C_QKV:C_QKV + 3 * H]               # (H, 3H)
    w_o = w_ref[0:H, C_WO:C_WO + H]                       # (H, H)
    w_1 = w_ref[0:H, C_W1:C_W1 + MLP_DIM]                 # (H, MLP_DIM)
    w_2 = w_ref[H:H + MLP_DIM, 0:H]                       # (MLP_DIM, H)

    bf16 = jnp.bfloat16

    # ---- LayerNorm 1 + fused QKV projection (bf16 MXU operands, f32 acc) ----
    xn = _layernorm(x, ln1_s, ln1_b)                      # f32
    qkv = jnp.dot(xn.astype(bf16), w_qkv,
                  preferred_element_type=jnp.float32) + b_qkv      # (rows, 3H) f32

    # ---- multi-head dot-product self-attention ----
    # TODO(synk): replace head loop with a single 'bqhd,bkhd->bhqk' einsum when
    # multi-batch-dim dot_general lowers on Mosaic; see header comment.
    ctx_heads = []
    for h in range(NUM_HEADS):
        lo = h * HEAD_DIM
        qh = qkv[:, lo:lo + HEAD_DIM].reshape(chunk_b, S, HEAD_DIM).astype(bf16)
        kh = qkv[:, H + lo:H + lo + HEAD_DIM].reshape(chunk_b, S, HEAD_DIM).astype(bf16)
        vh = qkv[:, 2 * H + lo:2 * H + lo + HEAD_DIM].reshape(chunk_b, S, HEAD_DIM).astype(bf16)
        s = jnp.einsum("bqd,bkd->bqk", qh, kh,
                       preferred_element_type=jnp.float32)         # (cb, S, S) f32
        s = s - jnp.max(s, axis=-1, keepdims=True)
        p = jnp.exp(s)
        p = p * pl.reciprocal(jnp.sum(p, axis=-1, keepdims=True), approx=True)
        oh = jnp.einsum("bqk,bkd->bqd", p.astype(bf16), vh,
                        preferred_element_type=jnp.float32)        # (cb, S, d) f32
        ctx_heads.append(oh.reshape(rows, HEAD_DIM))
    ctx = jnp.concatenate(ctx_heads, axis=-1)                      # (rows, H) f32

    # single output projection
    attn_out = jnp.dot(ctx.astype(bf16), w_o,
                       preferred_element_type=jnp.float32) + b_o

    # ---- residual 1 (dropouts are identity) ----
    x2 = x + attn_out

    # ---- LayerNorm 2 + MLP block ----
    y = _layernorm(x2, ln2_s, ln2_b)
    h1 = jnp.dot(y.astype(bf16), w_1,
                 preferred_element_type=jnp.float32) + b_1
    h1 = _gelu_tanh(h1)                                            # f32
    y2 = jnp.dot(h1.astype(bf16), w_2,
                 preferred_element_type=jnp.float32) + b_2

    # ---- residual 2 ----
    o_ref[...] = (x2 + y2).astype(o_ref.dtype)


def _pick_chunk_b(batch, seq, max_rows=512):
    """Largest divisor of `batch` whose chunk (cb*seq rows) stays modest in VMEM."""
    for cb in range(batch, 0, -1):
        if batch % cb == 0 and cb * seq <= max_rows:
            return cb
    return 1


CHUNK_B = _pick_chunk_b(B, S)          # = 2 at demo size -> single grid step


@jax.jit
def encoder1d_block(x, w_slab, vec_slab):
    """x: (B, S, H) f32, packed bf16 weight slab + f32 vector slab -> (B, S, H) f32."""
    b, s, hid = x.shape
    assert (b, s, hid) == (B, S, H)
    assert w_slab.shape == (W_ROWS, W_COLS) and w_slab.dtype == jnp.bfloat16
    assert vec_slab.shape == (VEC_ROWS, VEC_COLS) and vec_slab.dtype == jnp.float32

    x2d = x.reshape(B * S, H)
    grid = (B // CHUNK_B,)
    out2d = pl.pallas_call(
        functools.partial(encoder_block_kernel, chunk_b=CHUNK_B),
        out_shape=jax.ShapeDtypeStruct((B * S, H), jnp.float32),
        grid=grid,
        in_specs=[
            # activation chunk: iterates over the (batch-chunk) grid axis
            pl.BlockSpec((CHUNK_B * S, H), lambda i: (i, 0)),
            # parameter slabs: resident across all grid steps
            pl.BlockSpec((W_ROWS, W_COLS), lambda i: (0, 0)),
            pl.BlockSpec((VEC_ROWS, VEC_COLS), lambda i: (0, 0)),
        ],
        out_specs=pl.BlockSpec((CHUNK_B * S, H), lambda i: (i, 0)),
        input_output_aliases={0: 0},          # reuse the x buffer for the output
        compiler_params=pltpu.CompilerParams(
            dimension_semantics=("parallel",),          # chunks independent; shards on v7x 2 TCs
            vmem_limit_bytes=32 * 1024 * 1024,          # conservative vs 64 MiB physical on v7x
        ),
    )(x2d, w_slab, vec_slab)
    return out2d.reshape(B, S, H)


def init_params(key):
    """Deterministic synthetic parameters (xavier-ish scaled normals)."""
    ks = jax.random.split(key, 8)

    def dense(k, fan_in, fan_out):
        scale = math.sqrt(2.0 / (fan_in + fan_out))
        return scale * jax.random.normal(k, (fan_in, fan_out), jnp.float32)

    return {
        "ln1_scale": jnp.ones((H,), jnp.float32),
        "ln1_bias": jnp.zeros((H,), jnp.float32),
        "wq": dense(ks[0], H, H), "bq": jnp.zeros((H,), jnp.float32),
        "wk": dense(ks[1], H, H), "bk": jnp.zeros((H,), jnp.float32),
        "wv": dense(ks[2], H, H), "bv": jnp.zeros((H,), jnp.float32),
        "wo": dense(ks[3], H, H), "bo": jnp.zeros((H,), jnp.float32),
        "ln2_scale": jnp.ones((H,), jnp.float32),
        "ln2_bias": jnp.zeros((H,), jnp.float32),
        "w1": dense(ks[4], H, MLP_DIM), "b1": jnp.zeros((MLP_DIM,), jnp.float32),
        "w2": dense(ks[5], MLP_DIM, H), "b2": jnp.zeros((H,), jnp.float32),
    }


def pack_params(p):
    """One-time packing: 128-lane-aligned bf16 weight slab + f32 vector slab.

    The 1/sqrt(head_dim) query scale is folded into wq / bq here."""
    q_scale = 1.0 / math.sqrt(HEAD_DIM)

    w_slab = jnp.zeros((W_ROWS, W_COLS), jnp.float32)
    wqkv = jnp.concatenate([p["wq"] * q_scale, p["wk"], p["wv"]], axis=1)   # (H, 3H)
    w_slab = w_slab.at[0:H, C_QKV:C_QKV + 3 * H].set(wqkv)
    w_slab = w_slab.at[0:H, C_WO:C_WO + H].set(p["wo"])
    w_slab = w_slab.at[0:H, C_W1:C_W1 + MLP_DIM].set(p["w1"])
    w_slab = w_slab.at[H:H + MLP_DIM, 0:H].set(p["w2"])
    w_slab = w_slab.astype(jnp.bfloat16)

    vec = jnp.zeros((VEC_ROWS, VEC_COLS), jnp.float32)
    b_qkv = jnp.concatenate([jnp.reshape(p["bq"], (-1,)) * q_scale,
                             jnp.reshape(p["bk"], (-1,)),
                             jnp.reshape(p["bv"], (-1,))])
    for r, v in ((R_LN1_S, p["ln1_scale"]), (R_LN1_B, p["ln1_bias"]),
                 (R_LN2_S, p["ln2_scale"]), (R_LN2_B, p["ln2_bias"]),
                 (R_BQKV, b_qkv), (R_BO, p["bo"]),
                 (R_B1, p["b1"]), (R_B2, p["b2"])):
        v = jnp.reshape(v, (-1,))
        vec = vec.at[r, :v.shape[0]].set(v)

    assert w_slab.shape == (W_ROWS, W_COLS)
    assert vec.shape == (VEC_ROWS, VEC_COLS)
    return w_slab, vec


if __name__ == "__main__":
    key = jax.random.PRNGKey(0)
    k_x, k_p = jax.random.split(key)
    x = jax.random.normal(k_x, (B, S, H), jnp.float32)
    params = init_params(k_p)
    w_slab, vec_slab = pack_params(params)           # packed once, reused per call
    w_slab = jax.block_until_ready(w_slab)
    vec_slab = jax.block_until_ready(vec_slab)

    out = encoder1d_block(x, w_slab, vec_slab)
    out = jax.block_until_ready(out)
    assert out.shape == (B, S, H) and out.dtype == jnp.float32
    assert bool(jnp.all(jnp.isfinite(out)))
    print("KERNEL_OK")
</pallas_src>

<mosaic_0001>
module attributes {stable_mosaic.version = 11 : i64} {
  func.func @encoder_block_kernel(%arg0: i32, %arg1: memref<32x32xf32, #tpu.memory_space<vmem>>, %arg2: memref<96x384xbf16, #tpu.memory_space<vmem>>, %arg3: memref<8x128xf32, #tpu.memory_space<vmem>>, %arg4: memref<32x32xf32, #tpu.memory_space<vmem>>) attributes {dimension_semantics = [#tpu.dimension_semantics<parallel>], iteration_bounds = array<i64: 1>, scalar_prefetch = 0 : i64, scratch_operands = 0 : i64, tpu.core_type = #tpu.core_type<tc>, window_params = [{transform_indices = @transform_0, window_bounds = array<i64: 32, 32>}, {pipeline_mode = #tpu.pipeline_mode<synchronous>, transform_indices = @transform_1, window_bounds = array<i64: 96, 384>}, {pipeline_mode = #tpu.pipeline_mode<synchronous>, transform_indices = @transform_2, window_bounds = array<i64: 8, 128>}, {transform_indices = @transform_3, window_bounds = array<i64: 32, 32>}]} {
    %c0 = arith.constant 0 : index
    %c0_0 = arith.constant 0 : index
    %0 = vector.load %arg1[%c0, %c0_0] : memref<32x32xf32, #tpu.memory_space<vmem>>, vector<32x32xf32>
    %c0_1 = arith.constant 0 : index
    %c0_2 = arith.constant 0 : index
    %1 = vector.load %arg3[%c0_1, %c0_2] : memref<8x128xf32, #tpu.memory_space<vmem>>, vector<1x32xf32>
    %c1 = arith.constant 1 : index
    %c0_3 = arith.constant 0 : index
    %2 = vector.load %arg3[%c1, %c0_3] : memref<8x128xf32, #tpu.memory_space<vmem>>, vector<1x32xf32>
    %c2 = arith.constant 2 : index
    %c0_4 = arith.constant 0 : index
    %3 = vector.load %arg3[%c2, %c0_4] : memref<8x128xf32, #tpu.memory_space<vmem>>, vector<1x32xf32>
    %c3 = arith.constant 3 : index
    %c0_5 = arith.constant 0 : index
    %4 = vector.load %arg3[%c3, %c0_5] : memref<8x128xf32, #tpu.memory_space<vmem>>, vector<1x32xf32>
    %c4 = arith.constant 4 : index
    %c0_6 = arith.constant 0 : index
    %5 = vector.load %arg3[%c4, %c0_6] : memref<8x128xf32, #tpu.memory_space<vmem>>, vector<1x96xf32>
    %c5 = arith.constant 5 : index
    %c0_7 = arith.constant 0 : index
    %6 = vector.load %arg3[%c5, %c0_7] : memref<8x128xf32, #tpu.memory_space<vmem>>, vector<1x32xf32>
    %c6 = arith.constant 6 : index
    %c0_8 = arith.constant 0 : index
    %7 = vector.load %arg3[%c6, %c0_8] : memref<8x128xf32, #tpu.memory_space<vmem>>, vector<1x64xf32>
    %c7 = arith.constant 7 : index
    %c0_9 = arith.constant 0 : index
    %8 = vector.load %arg3[%c7, %c0_9] : memref<8x128xf32, #tpu.memory_space<vmem>>, vector<1x32xf32>
    %c0_10 = arith.constant 0 : index
    %c0_11 = arith.constant 0 : index
    %9 = vector.load %arg2[%c0_10, %c0_11] : memref<96x384xbf16, #tpu.memory_space<vmem>>, vector<32x96xbf16>
    %c0_12 = arith.constant 0 : index
    %c128 = arith.constant 128 : index
    %10 = vector.load %arg2[%c0_12, %c128] : memref<96x384xbf16, #tpu.memory_space<vmem>>, vector<32x32xbf16>
    %c0_13 = arith.constant 0 : index
    %c256 = arith.constant 256 : index
    %11 = vector.load %arg2[%c0_13, %c256] : memref<96x384xbf16, #tpu.memory_space<vmem>>, vector<32x64xbf16>
    %c32 = arith.constant 32 : index
    %c0_14 = arith.constant 0 : index
    %12 = vector.load %arg2[%c32, %c0_14] : memref<96x384xbf16, #tpu.memory_space<vmem>>, vector<64x32xbf16>
    %cst = arith.constant dense<0.000000e+00> : vector<32xf32>
    %13 = vector.multi_reduction <add>, %0, %cst [1] : vector<32x32xf32> to vector<32xf32>
    %14 = vector.shape_cast %13 : vector<32xf32> to vector<32x1xf32>
    %cst_15 = arith.constant 3.200000e+01 : f32
    %15 = vector.broadcast %cst_15 : f32 to vector<32x1xf32>
    %16 = arith.divf %14, %15 : vector<32x1xf32>
    %17 = vector.broadcast %16 : vector<32x1xf32> to vector<32x32xf32>
    %18 = arith.subf %0, %17 : vector<32x32xf32>
    %19 = arith.mulf %18, %18 : vector<32x32xf32>
    %cst_16 = arith.constant dense<0.000000e+00> : vector<32xf32>
    %20 = vector.multi_reduction <add>, %19, %cst_16 [1] : vector<32x32xf32> to vector<32xf32>
    %21 = vector.shape_cast %20 : vector<32xf32> to vector<32x1xf32>
    %cst_17 = arith.constant 3.200000e+01 : f32
    %22 = vector.broadcast %cst_17 : f32 to vector<32x1xf32>
    %23 = arith.divf %21, %22 : vector<32x1xf32>
    %24 = vector.broadcast %16 : vector<32x1xf32> to vector<32x32xf32>
    %25 = arith.subf %0, %24 : vector<32x32xf32>
    %cst_18 = arith.constant 9.99999997E-7 : f32
    %26 = vector.broadcast %cst_18 : f32 to vector<32x1xf32>
    %27 = arith.addf %23, %26 : vector<32x1xf32>
    %28 = math.rsqrt %27 : vector<32x1xf32>
    %29 = vector.broadcast %28 : vector<32x1xf32> to vector<32x32xf32>
    %30 = arith.mulf %25, %29 : vector<32x32xf32>
    %31 = vector.broadcast %1 : vector<1x32xf32> to vector<32x32xf32>
    %32 = arith.mulf %30, %31 : vector<32x32xf32>
    %33 = vector.broadcast %2 : vector<1x32xf32> to vector<32x32xf32>
    %34 = arith.addf %32, %33 : vector<32x32xf32>
    %35 = arith.truncf %34 : vector<32x32xf32> to vector<32x32xbf16>
    %cst_19 = arith.constant dense<0.000000e+00> : vector<32x96xf32>
    %36 = tpu.matmul %35, %9, %cst_19 {dimension_numbers = #tpu.dot_dimension_numbers<[1], [0], [0], [1], [0, 0, 1, 1], [], []>} : vector<32x32xbf16>, vector<32x96xbf16>, vector<32x96xf32> -> vector<32x96xf32>
    %37 = vector.broadcast %5 : vector<1x96xf32> to vector<32x96xf32>
    %38 = arith.addf %36, %37 : vector<32x96xf32>
    %39 = vector.extract_strided_slice %38 {offsets = [0, 0], sizes = [32, 8], strides = [1, 1]} : vector<32x96xf32> to vector<32x8xf32>
    %40 = vector.shape_cast %39 : vector<32x8xf32> to vector<2x16x8xf32>
    %41 = arith.truncf %40 : vector<2x16x8xf32> to vector<2x16x8xbf16>
    %42 = vector.extract_strided_slice %38 {offsets = [0, 32], sizes = [32, 8], strides = [1, 1]} : vector<32x96xf32> to vector<32x8xf32>
    %43 = vector.shape_cast %42 : vector<32x8xf32> to vector<2x16x8xf32>
    %44 = arith.truncf %43 : vector<2x16x8xf32> to vector<2x16x8xbf16>
    %45 = vector.extract_strided_slice %38 {offsets = [0, 64], sizes = [32, 8], strides = [1, 1]} : vector<32x96xf32> to vector<32x8xf32>
    %46 = vector.shape_cast %45 : vector<32x8xf32> to vector<2x16x8xf32>
    %47 = arith.truncf %46 : vector<2x16x8xf32> to vector<2x16x8xbf16>
    "tpu.trace_start"() <{level = 10 : i32, message = "bqd,bkd->bqk"}> : () -> ()
    %cst_20 = arith.constant dense<0.000000e+00> : vector<2x16x16xf32>
    %48 = tpu.matmul %41, %44, %cst_20 {dimension_numbers = #tpu.dot_dimension_numbers<[2], [2], [1], [1], [0, 0, 0, 1, 1, 1], [0], [0]>} : vector<2x16x8xbf16>, vector<2x16x8xbf16>, vector<2x16x16xf32> -> vector<2x16x16xf32>
    "tpu.trace_stop"() : () -> ()
    %cst_21 = arith.constant dense<0xFF800000> : vector<2x16xf32>
    %49 = vector.multi_reduction <maximumf>, %48, %cst_21 [2] : vector<2x16x16xf32> to vector<2x16xf32>
    %50 = vector.shape_cast %49 : vector<2x16xf32> to vector<2x16x1xf32>
    %51 = vector.broadcast %50 : vector<2x16x1xf32> to vector<2x16x16xf32>
    %52 = arith.subf %48, %51 : vector<2x16x16xf32>
    %53 = math.exp %52 : vector<2x16x16xf32>
    %cst_22 = arith.constant dense<0.000000e+00> : vector<2x16xf32>
    %54 = vector.multi_reduction <add>, %53, %cst_22 [2] : vector<2x16x16xf32> to vector<2x16xf32>
    %55 = vector.shape_cast %54 : vector<2x16xf32> to vector<2x16x1xf32>
    %56 = tpu.reciprocal %55 {approx = true} : vector<2x16x1xf32> -> vector<2x16x1xf32>
    %57 = vector.broadcast %56 : vector<2x16x1xf32> to vector<2x16x16xf32>
    %58 = arith.mulf %53, %57 : vector<2x16x16xf32>
    %59 = arith.truncf %58 : vector<2x16x16xf32> to vector<2x16x16xbf16>
    "tpu.trace_start"() <{level = 10 : i32, message = "bqk,bkd->bqd"}> : () -> ()
    %cst_23 = arith.constant dense<0.000000e+00> : vector<2x16x8xf32>
    %60 = tpu.matmul %59, %47, %cst_23 {dimension_numbers = #tpu.dot_dimension_numbers<[2], [1], [1], [2], [0, 0, 0, 1, 1, 2], [0], [0]>} : vector<2x16x16xbf16>, vector<2x16x8xbf16>, vector<2x16x8xf32> -> vector<2x16x8xf32>
    "tpu.trace_stop"() : () -> ()
    %61 = vector.shape_cast %60 : vector<2x16x8xf32> to vector<32x8xf32>
    %62 = vector.extract_strided_slice %38 {offsets = [0, 8], sizes = [32, 8], strides = [1, 1]} : vector<32x96xf32> to vector<32x8xf32>
    %63 = vector.shape_cast %62 : vector<32x8xf32> to vector<2x16x8xf32>
    %64 = arith.truncf %63 : vector<2x16x8xf32> to vector<2x16x8xbf16>
    %65 = vector.extract_strided_slice %38 {offsets = [0, 40], sizes = [32, 8], strides = [1, 1]} : vector<32x96xf32> to vector<32x8xf32>
    %66 = vector.shape_cast %65 : vector<32x8xf32> to vector<2x16x8xf32>
    %67 = arith.truncf %66 : vector<2x16x8xf32> to vector<2x16x8xbf16>
    %68 = vector.extract_strided_slice %38 {offsets = [0, 72], sizes = [32, 8], strides = [1, 1]} : vector<32x96xf32> to vector<32x8xf32>
    %69 = vector.shape_cast %68 : vector<32x8xf32> to vector<2x16x8xf32>
    %70 = arith.truncf %69 : vector<2x16x8xf32> to vector<2x16x8xbf16>
    "tpu.trace_start"() <{level = 10 : i32, message = "bqd,bkd->bqk"}> : () -> ()
    %cst_24 = arith.constant dense<0.000000e+00> : vector<2x16x16xf32>
    %71 = tpu.matmul %64, %67, %cst_24 {dimension_numbers = #tpu.dot_dimension_numbers<[2], [2], [1], [1], [0, 0, 0, 1, 1, 1], [0], [0]>} : vector<2x16x8xbf16>, vector<2x16x8xbf16>, vector<2x16x16xf32> -> vector<2x16x16xf32>
    "tpu.trace_stop"() : () -> ()
    %cst_25 = arith.constant dense<0xFF800000> : vector<2x16xf32>
    %72 = vector.multi_reduction <maximumf>, %71, %cst_25 [2] : vector<2x16x16xf32> to vector<2x16xf32>
    %73 = vector.shape_cast %72 : vector<2x16xf32> to vector<2x16x1xf32>
    %74 = vector.broadcast %73 : vector<2x16x1xf32> to vector<2x16x16xf32>
    %75 = arith.subf %71, %74 : vector<2x16x16xf32>
    %76 = math.exp %75 : vector<2x16x16xf32>
    %cst_26 = arith.constant dense<0.000000e+00> : vector<2x16xf32>
    %77 = vector.multi_reduction <add>, %76, %cst_26 [2] : vector<2x16x16xf32> to vector<2x16xf32>
    %78 = vector.shape_cast %77 : vector<2x16xf32> to vector<2x16x1xf32>
    %79 = tpu.reciprocal %78 {approx = true} : vector<2x16x1xf32> -> vector<2x16x1xf32>
    %80 = vector.broadcast %79 : vector<2x16x1xf32> to vector<2x16x16xf32>
    %81 = arith.mulf %76, %80 : vector<2x16x16xf32>
    %82 = arith.truncf %81 : vector<2x16x16xf32> to vector<2x16x16xbf16>
    "tpu.trace_start"() <{level = 10 : i32, message = "bqk,bkd->bqd"}> : () -> ()
    %cst_27 = arith.constant dense<0.000000e+00> : vector<2x16x8xf32>
    %83 = tpu.matmul %82, %70, %cst_27 {dimension_numbers = #tpu.dot_dimension_numbers<[2], [1], [1], [2], [0, 0, 0, 1, 1, 2], [0], [0]>} : vector<2x16x16xbf16>, vector<2x16x8xbf16>, vector<2x16x8xf32> -> vector<2x16x8xf32>
    "tpu.trace_stop"() : () -> ()
    %84 = vector.shape_cast %83 : vector<2x16x8xf32> to vector<32x8xf32>
    %85 = vector.extract_strided_slice %38 {offsets = [0, 16], sizes = [32, 8], strides = [1, 1]} : vector<32x96xf32> to vector<32x8xf32>
    %86 = vector.shape_cast %85 : vector<32x8xf32> to vector<2x16x8xf32>
    %87 = arith.truncf %86 : vector<2x16x8xf32> to vector<2x16x8xbf16>
    %88 = vector.extract_strided_slice %38 {offsets = [0, 48], sizes = [32, 8], strides = [1, 1]} : vector<32x96xf32> to vector<32x8xf32>
    %89 = vector.shape_cast %88 : vector<32x8xf32> to vector<2x16x8xf32>
    %90 = arith.truncf %89 : vector<2x16x8xf32> to vector<2x16x8xbf16>
    %91 = vector.extract_strided_slice %38 {offsets = [0, 80], sizes = [32, 8], strides = [1, 1]} : vector<32x96xf32> to vector<32x8xf32>
    %92 = vector.shape_cast %91 : vector<32x8xf32> to vector<2x16x8xf32>
    %93 = arith.truncf %92 : vector<2x16x8xf32> to vector<2x16x8xbf16>
    "tpu.trace_start"() <{level = 10 : i32, message = "bqd,bkd->bqk"}> : () -> ()
    %cst_28 = arith.constant dense<0.000000e+00> : vector<2x16x16xf32>
    %94 = tpu.matmul %87, %90, %cst_28 {dimension_numbers = #tpu.dot_dimension_numbers<[2], [2], [1], [1], [0, 0, 0, 1, 1, 1], [0], [0]>} : vector<2x16x8xbf16>, vector<2x16x8xbf16>, vector<2x16x16xf32> -> vector<2x16x16xf32>
    "tpu.trace_stop"() : () -> ()
    %cst_29 = arith.constant dense<0xFF800000> : vector<2x16xf32>
    %95 = vector.multi_reduction <maximumf>, %94, %cst_29 [2] : vector<2x16x16xf32> to vector<2x16xf32>
    %96 = vector.shape_cast %95 : vector<2x16xf32> to vector<2x16x1xf32>
    %97 = vector.broadcast %96 : vector<2x16x1xf32> to vector<2x16x16xf32>
    %98 = arith.subf %94, %97 : vector<2x16x16xf32>
    %99 = math.exp %98 : vector<2x16x16xf32>
    %cst_30 = arith.constant dense<0.000000e+00> : vector<2x16xf32>
    %100 = vector.multi_reduction <add>, %99, %cst_30 [2] : vector<2x16x16xf32> to vector<2x16xf32>
    %101 = vector.shape_cast %100 : vector<2x16xf32> to vector<2x16x1xf32>
    %102 = tpu.reciprocal %101 {approx = true} : vector<2x16x1xf32> -> vector<2x16x1xf32>
    %103 = vector.broadcast %102 : vector<2x16x1xf32> to vector<2x16x16xf32>
    %104 = arith.mulf %99, %103 : vector<2x16x16xf32>
    %105 = arith.truncf %104 : vector<2x16x16xf32> to vector<2x16x16xbf16>
    "tpu.trace_start"() <{level = 10 : i32, message = "bqk,bkd->bqd"}> : () -> ()
    %cst_31 = arith.constant dense<0.000000e+00> : vector<2x16x8xf32>
    %106 = tpu.matmul %105, %93, %cst_31 {dimension_numbers = #tpu.dot_dimension_numbers<[2], [1], [1], [2], [0, 0, 0, 1, 1, 2], [0], [0]>} : vector<2x16x16xbf16>, vector<2x16x8xbf16>, vector<2x16x8xf32> -> vector<2x16x8xf32>
    "tpu.trace_stop"() : () -> ()
    %107 = vector.shape_cast %106 : vector<2x16x8xf32> to vector<32x8xf32>
    %108 = vector.extract_strided_slice %38 {offsets = [0, 24], sizes = [32, 8], strides = [1, 1]} : vector<32x96xf32> to vector<32x8xf32>
    %109 = vector.shape_cast %108 : vector<32x8xf32> to vector<2x16x8xf32>
    %110 = arith.truncf %109 : vector<2x16x8xf32> to vector<2x16x8xbf16>
    %111 = vector.extract_strided_slice %38 {offsets = [0, 56], sizes = [32, 8], strides = [1, 1]} : vector<32x96xf32> to vector<32x8xf32>
    %112 = vector.shape_cast %111 : vector<32x8xf32> to vector<2x16x8xf32>
    %113 = arith.truncf %112 : vector<2x16x8xf32> to vector<2x16x8xbf16>
    %114 = vector.extract_strided_slice %38 {offsets = [0, 88], sizes = [32, 8], strides = [1, 1]} : vector<32x96xf32> to vector<32x8xf32>
    %115 = vector.shape_cast %114 : vector<32x8xf32> to vector<2x16x8xf32>
    %116 = arith.truncf %115 : vector<2x16x8xf32> to vector<2x16x8xbf16>
    "tpu.trace_start"() <{level = 10 : i32, message = "bqd,bkd->bqk"}> : () -> ()
    %cst_32 = arith.constant dense<0.000000e+00> : vector<2x16x16xf32>
    %117 = tpu.matmul %110, %113, %cst_32 {dimension_numbers = #tpu.dot_dimension_numbers<[2], [2], [1], [1], [0, 0, 0, 1, 1, 1], [0], [0]>} : vector<2x16x8xbf16>, vector<2x16x8xbf16>, vector<2x16x16xf32> -> vector<2x16x16xf32>
    "tpu.trace_stop"() : () -> ()
    %cst_33 = arith.constant dense<0xFF800000> : vector<2x16xf32>
    %118 = vector.multi_reduction <maximumf>, %117, %cst_33 [2] : vector<2x16x16xf32> to vector<2x16xf32>
    %119 = vector.shape_cast %118 : vector<2x16xf32> to vector<2x16x1xf32>
    %120 = vector.broadcast %119 : vector<2x16x1xf32> to vector<2x16x16xf32>
    %121 = arith.subf %117, %120 : vector<2x16x16xf32>
    %122 = math.exp %121 : vector<2x16x16xf32>
    %cst_34 = arith.constant dense<0.000000e+00> : vector<2x16xf32>
    %123 = vector.multi_reduction <add>, %122, %cst_34 [2] : vector<2x16x16xf32> to vector<2x16xf32>
    %124 = vector.shape_cast %123 : vector<2x16xf32> to vector<2x16x1xf32>
    %125 = tpu.reciprocal %124 {approx = true} : vector<2x16x1xf32> -> vector<2x16x1xf32>
    %126 = vector.broadcast %125 : vector<2x16x1xf32> to vector<2x16x16xf32>
    %127 = arith.mulf %122, %126 : vector<2x16x16xf32>
    %128 = arith.truncf %127 : vector<2x16x16xf32> to vector<2x16x16xbf16>
    "tpu.trace_start"() <{level = 10 : i32, message = "bqk,bkd->bqd"}> : () -> ()
    %cst_35 = arith.constant dense<0.000000e+00> : vector<2x16x8xf32>
    %129 = tpu.matmul %128, %116, %cst_35 {dimension_numbers = #tpu.dot_dimension_numbers<[2], [1], [1], [2], [0, 0, 0, 1, 1, 2], [0], [0]>} : vector<2x16x16xbf16>, vector<2x16x8xbf16>, vector<2x16x8xf32> -> vector<2x16x8xf32>
    "tpu.trace_stop"() : () -> ()
    %130 = vector.shape_cast %129 : vector<2x16x8xf32> to vector<32x8xf32>
    %131 = tpu.concatenate %61, %84, %107, %130 in 1 : vector<32x8xf32>, vector<32x8xf32>, vector<32x8xf32>, vector<32x8xf32> -> vector<32x32xf32>
    %132 = arith.truncf %131 : vector<32x32xf32> to vector<32x32xbf16>
    %cst_36 = arith.constant dense<0.000000e+00> : vector<32x32xf32>
    %133 = tpu.matmul %132, %10, %cst_36 {dimension_numbers = #tpu.dot_dimension_numbers<[1], [0], [0], [1], [0, 0, 1, 1], [], []>} : vector<32x32xbf16>, vector<32x32xbf16>, vector<32x32xf32> -> vector<32x32xf32>
    %134 = vector.broadcast %6 : vector<1x32xf32> to vector<32x32xf32>
    %135 = arith.addf %133, %134 : vector<32x32xf32>
    %136 = arith.addf %0, %135 : vector<32x32xf32>
    %cst_37 = arith.constant dense<0.000000e+00> : vector<32xf32>
    %137 = vector.multi_reduction <add>, %136, %cst_37 [1] : vector<32x32xf32> to vector<32xf32>
    %138 = vector.shape_cast %137 : vector<32xf32> to vector<32x1xf32>
    %cst_38 = arith.constant 3.200000e+01 : f32
    %139 = vector.broadcast %cst_38 : f32 to vector<32x1xf32>
    %140 = arith.divf %138, %139 : vector<32x1xf32>
    %141 = vector.broadcast %140 : vector<32x1xf32> to vector<32x32xf32>
    %142 = arith.subf %136, %141 : vector<32x32xf32>
    %143 = arith.mulf %142, %142 : vector<32x32xf32>
    %cst_39 = arith.constant dense<0.000000e+00> : vector<32xf32>
    %144 = vector.multi_reduction <add>, %143, %cst_39 [1] : vector<32x32xf32> to vector<32xf32>
    %145 = vector.shape_cast %144 : vector<32xf32> to vector<32x1xf32>
    %cst_40 = arith.constant 3.200000e+01 : f32
    %146 = vector.broadcast %cst_40 : f32 to vector<32x1xf32>
    %147 = arith.divf %145, %146 : vector<32x1xf32>
    %148 = vector.broadcast %140 : vector<32x1xf32> to vector<32x32xf32>
    %149 = arith.subf %136, %148 : vector<32x32xf32>
    %cst_41 = arith.constant 9.99999997E-7 : f32
    %150 = vector.broadcast %cst_41 : f32 to vector<32x1xf32>
    %151 = arith.addf %147, %150 : vector<32x1xf32>
    %152 = math.rsqrt %151 : vector<32x1xf32>
    %153 = vector.broadcast %152 : vector<32x1xf32> to vector<32x32xf32>
    %154 = arith.mulf %149, %153 : vector<32x32xf32>
    %155 = vector.broadcast %3 : vector<1x32xf32> to vector<32x32xf32>
    %156 = arith.mulf %154, %155 : vector<32x32xf32>
    %157 = vector.broadcast %4 : vector<1x32xf32> to vector<32x32xf32>
    %158 = arith.addf %156, %157 : vector<32x32xf32>
    %159 = arith.truncf %158 : vector<32x32xf32> to vector<32x32xbf16>
    %cst_42 = arith.constant dense<0.000000e+00> : vector<32x64xf32>
    %160 = tpu.matmul %159, %11, %cst_42 {dimension_numbers = #tpu.dot_dimension_numbers<[1], [0], [0], [1], [0, 0, 1, 1], [], []>} : vector<32x32xbf16>, vector<32x64xbf16>, vector<32x64xf32> -> vector<32x64xf32>
    %161 = vector.broadcast %7 : vector<1x64xf32> to vector<32x64xf32>
    %162 = arith.addf %160, %161 : vector<32x64xf32>
    %cst_43 = arith.constant 5.000000e-01 : f32
    %163 = vector.broadcast %cst_43 : f32 to vector<32x64xf32>
    %164 = arith.mulf %163, %162 : vector<32x64xf32>
    %cst_44 = arith.constant 4.471500e-02 : f32
    %165 = vector.broadcast %cst_44 : f32 to vector<32x64xf32>
    %166 = arith.mulf %165, %162 : vector<32x64xf32>
    %167 = arith.mulf %166, %162 : vector<32x64xf32>
    %168 = arith.mulf %167, %162 : vector<32x64xf32>
    %169 = arith.addf %162, %168 : vector<32x64xf32>
    %cst_45 = arith.constant 0.797884583 : f32
    %170 = vector.broadcast %cst_45 : f32 to vector<32x64xf32>
    %171 = arith.mulf %170, %169 : vector<32x64xf32>
    %172 = math.tanh %171 : vector<32x64xf32>
    %cst_46 = arith.constant 1.000000e+00 : f32
    %173 = vector.broadcast %cst_46 : f32 to vector<32x64xf32>
    %174 = arith.addf %173, %172 : vector<32x64xf32>
    %175 = arith.mulf %164, %174 : vector<32x64xf32>
    %176 = arith.truncf %175 : vector<32x64xf32> to vector<32x64xbf16>
    %cst_47 = arith.constant dense<0.000000e+00> : vector<32x32xf32>
    %177 = tpu.matmul %176, %12, %cst_47 {dimension_numbers = #tpu.dot_dimension_numbers<[1], [0], [0], [1], [0, 0, 1, 1], [], []>} : vector<32x64xbf16>, vector<64x32xbf16>, vector<32x32xf32> -> vector<32x32xf32>
    %178 = vector.broadcast %8 : vector<1x32xf32> to vector<32x32xf32>
    %179 = arith.addf %177, %178 : vector<32x32xf32>
    %180 = arith.addf %136, %179 : vector<32x32xf32>
    %c0_48 = arith.constant 0 : index
    %c0_49 = arith.constant 0 : index
    %181 = vector.load %arg4[%c0_48, %c0_49] : memref<32x32xf32, #tpu.memory_space<vmem>>, vector<32x32xf32>
    tpu.vector_store %arg4[%c0_48, %c0_49], %180 {strides = array<i32>} : memref<32x32xf32, #tpu.memory_space<vmem>>, vector<32x32xf32>,
    return
  }
  func.func @transform_0(%arg0: i32) -> (i32, i32) {
    %c0_i32 = arith.constant 0 : i32
    %c0_i32_0 = arith.constant 0 : i32
    return %arg0, %c0_i32 : i32, i32
  }
  func.func @transform_1(%arg0: i32) -> (i32, i32) {
    %c0_i32 = arith.constant 0 : i32
    %c0_i32_0 = arith.constant 0 : i32
    %c0_i32_1 = arith.constant 0 : i32
    return %c0_i32, %c0_i32_0 : i32, i32
  }
  func.func @transform_2(%arg0: i32) -> (i32, i32) {
    %c0_i32 = arith.constant 0 : i32
    %c0_i32_0 = arith.constant 0 : i32
    %c0_i32_1 = arith.constant 0 : i32
    return %c0_i32, %c0_i32_0 : i32, i32
  }
  func.func @transform_3(%arg0: i32) -> (i32, i32) {
    %c0_i32 = arith.constant 0 : i32
    %c0_i32_0 = arith.constant 0 : i32
    return %arg0, %c0_i32 : i32, i32
  }
}

</mosaic_0001>

<llo_original>
// kernel: encoder1d_block.1
$region0: #{encoder1d_block.1}
  #allocation0 [shape = 'u32[]', space=smem, size = 0x4, offset = 0x4, fixed_abs, tag = 'smem constant byte address 0x4 - core index']
  #allocation1 [shape = 'u32[72,128]{1,0:T(1,128)}', space=vmem, size = 0x9000, scoped, tag = 'internal scratch']
  %s0 = inlined_call_operand.vmem [shape: f32[32,32], index: 0, kind: input, shape index: {}, may-alias: {0,3}]
  %s1 = inlined_call_operand.hbm [shape: bf16[96,384], index: 1, kind: input, shape index: {}]
  %s2 = inlined_call_operand.vmem [shape: f32[8,128], index: 2, kind: input, shape index: {}]
  %s3 = inlined_call_operand.vmem [shape: f32[32,32], index: 3, kind: output, shape index: {}, may-alias: {0,3}]
  %s4 = sld [smem:[#allocation0]]
  $region26: #{encoder1d_block.1} parent=0
    _
  %s6 = ssub.s32 1, %s4
  %s7 = scalar_select 0, %s6, %s4
  $region1: #{encoder1d_block.1} parent=0
    #allocation2 [shape = 'u8[73728]{0}', space=vmem, size = 0x12000, scoped, tag = 'input window, operand 1, single buffered']
    #allocation3 [shape = 's32[1]{0}', space=sflag, size = 0x4, scoped, tag = 'scoped memory for encoder1d_block.1']
    %8 = vsyncpa [#allocation3], 0
    // Predicated region
    $region2: #{encoder1d_block.1} parent=1 // pred_check
      _
    $region3: #{encoder1d_block.1} parent=1 // pred_check_branch
      %10 = sbr.rel (0) target = $region5
    $region4: #{encoder1d_block.1} parent=1 // pred_region
      _
    $region5: #{encoder1d_block.1} parent=1 // pred_fallthru
      _
    // Predicated region
    $region6: #{encoder1d_block.1} parent=1 // pred_check
      _
    $region7: #{encoder1d_block.1} parent=1 // pred_check_branch
      %12 = sbr.rel (0) target = $region9
    $region8: #{encoder1d_block.1} parent=1 // pred_region
      %14 = vsyncadd [#allocation3], 0
      %s15 = sshll.u32 %s1, 4
      %s16 = int_to_ptr.hbm [resolvable:$true] %s15
      %s17 = sshll.u32 [#allocation2], 4
      %s18 = int_to_ptr.vmem [resolvable:$true] %s17
      %23 = dma.hbm_to_vmem [thread:$0]  %s16, 2304, %s18, [#allocation3], 192, 192, 12
    $region9: #{encoder1d_block.1} parent=1 // pred_fallthru
      _
    // Predicated region
    $region10: #{encoder1d_block.1} parent=1 // pred_check
      _
    $region11: #{encoder1d_block.1} parent=1 // pred_check_branch
      %25 = sbr.rel (0) target = $region13
    $region12: #{encoder1d_block.1} parent=1 // pred_region
      _
    $region13: #{encoder1d_block.1} parent=1 // pred_fallthru
      _
    // Predicated region
    $region14: #{encoder1d_block.1} parent=1 // pred_check
      _
    $region15: #{encoder1d_block.1} parent=1 // pred_check_branch
      %27 = sbr.rel (0) target = $region17
    $region16: #{encoder1d_block.1} parent=1 // pred_region
      %29 = dma.done [#allocation3], 2304
    $region17: #{encoder1d_block.1} parent=1 // pred_fallthru
      _
    %v31 = vld [vmem:[%s0] sm:$0xff]
    %v32 = vld [vmem:[%s0 + $0x8] sm:$0xff]
    %v33 = vld [vmem:[%s0 + $0x10] sm:$0xff]
    %v34 = vld [vmem:[%s0 + $0x18] sm:$0xff]
    %v35 = vld [vmem:[%s2] sm:$0x1]
    %v36 = vld [vmem:[%s2 + $0x1] sm:$0x1]
    %v37 = vld [vmem:[%s2 + $0x2] sm:$0x1]
    %v38 = vld [vmem:[%s2 + $0x3] sm:$0x1]
    %v39 = vld [vmem:[%s2 + $0x4] sm:$0x1]
    %v40 = vld [vmem:[%s2 + $0x5] sm:$0x1]
    %v41 = vld [vmem:[%s2 + $0x6] sm:$0x1]
    %v42 = vld [vmem:[%s2 + $0x7] sm:$0x1]
    %v43 = vld [vmem:[#allocation2] sm:$0xf]
    %v44 = vld [vmem:[#allocation2 + $0xc] sm:$0xf]
    %v45 = vld [vmem:[#allocation2 + $0x18] sm:$0xf]
    %v46 = vld [vmem:[#allocation2 + $0x24] sm:$0xf]
    %v47 = vld [vmem:[#allocation2 + $0x4] sm:$0xf]
    %v48 = vld [vmem:[#allocation2 + $0x10] sm:$0xf]
    %v49 = vld [vmem:[#allocation2 + $0x1c] sm:$0xf]
    %v50 = vld [vmem:[#allocation2 + $0x28] sm:$0xf]
    %v51 = vld [vmem:[#allocation2 + $0x8] sm:$0xf]
    %v52 = vld [vmem:[#allocation2 + $0x14] sm:$0xf]
    %v53 = vld [vmem:[#allocation2 + $0x20] sm:$0xf]
    %v54 = vld [vmem:[#allocation2 + $0x2c] sm:$0xf]
    %v55 = vld [vmem:[#allocation2 + $0x30] sm:$0xf]
    %v56 = vld [vmem:[#allocation2 + $0x3c] sm:$0xf]
    %v57 = vld [vmem:[#allocation2 + $0x48] sm:$0xf]
    %v58 = vld [vmem:[#allocation2 + $0x54] sm:$0xf]
    %v59 = vld [vmem:[#allocation2 + $0x60] sm:$0xf]
    %v60 = vld [vmem:[#allocation2 + $0x6c] sm:$0xf]
    %v61 = vld [vmem:[#allocation2 + $0x78] sm:$0xf]
    %v62 = vld [vmem:[#allocation2 + $0x84] sm:$0xf]
    %vm63 = vcmask 261120
    %v64 = vsel %vm63, %v31, 0.0
    %65 = vadd.xlane.f32.xlu0 %v64
    %v66 = vpop.xlane.xlu0 %65
    %v67 = vsel %vm63, %v32, 0.0
    %68 = vadd.xlane.f32.xlu0 %v67
    %v69 = vpop.xlane.xlu0 %68
    %v70 = vsel %vm63, %v33, 0.0
    %71 = vadd.xlane.f32.xlu0 %v70
    %v72 = vpop.xlane.xlu0 %71
    %v73 = vsel %vm63, %v34, 0.0
    %74 = vadd.xlane.f32.xlu0 %v73
    %v75 = vpop.xlane.xlu0 %74
    %v76 = vrcp.pop 32.0
    %v77 = vmul.f32 32.0, %v76
    %v78 = vsub.f32 1.0, %v77
    %v79 = vmul.f32 %v76, %v78
    %v80 = vadd.f32 %v76, %v79
    %vm81 = vweird.f32 %v76
    %v82 = vsel %vm81, %v76, %v80
    %v83 = vmul.f32 %v66, %v82
    %v84 = vmul.f32 %v69, %v82
    %v85 = vmul.f32 %v72, %v82
    %v86 = vmul.f32 %v75, %v82
    %v87 = vsub.f32 %v31, %v83
    %v88 = vsub.f32 %v32, %v84
    %v89 = vsub.f32 %v33, %v85
    %v90 = vsub.f32 %v34, %v86
    %v91 = vmul.f32 %v87, %v87
    %v92 = vmul.f32 %v88, %v88
    %v93 = vmul.f32 %v89, %v89
    %v94 = vmul.f32 %v90, %v90
    %v95 = vsel %vm63, %v91, 0.0
    %96 = vadd.xlane.f32.xlu0 %v95
    %v97 = vpop.xlane.xlu0 %96
    %v98 = vsel %vm63, %v92, 0.0
    %99 = vadd.xlane.f32.xlu0 %v98
    %v100 = vpop.xlane.xlu0 %99
    %v101 = vsel %vm63, %v93, 0.0
    %102 = vadd.xlane.f32.xlu0 %v101
    %v103 = vpop.xlane.xlu0 %102
    %v104 = vsel %vm63, %v94, 0.0
    %105 = vadd.xlane.f32.xlu0 %v104
    %v106 = vpop.xlane.xlu0 %105
    %v107 = vmul.f32 %v97, %v82
    %v108 = vmul.f32 %v100, %v82
    %v109 = vmul.f32 %v103, %v82
    %v110 = vmul.f32 %v106, %v82
    %v111 = vadd.f32 %v107, 1e-06
    %v112 = vadd.f32 %v108, 1e-06
    %v113 = vadd.f32 %v109, 1e-06
    %v114 = vadd.f32 %v110, 1e-06
    %v115 = vrsqrt.pop %v111
    %v116 = vmul.f32 %v115, %v111
    %v117 = vmul.f32 %v116, %v115
    %v118 = vmul.f32 0.5, %v117
    %v119 = vsub.f32 1.5, %v118
    %v120 = vmul.f32 %v115, %v119
    %vm121 = vweird.f32 %v111
    %vm122 = vweird.f32 %v115
    %vm123 = vmor %vm121, %vm122
    %v124 = vsel %vm123, %v115, %v120
    %v125 = vrsqrt.pop %v112
    %v126 = vmul.f32 %v125, %v112
    %v127 = vmul.f32 %v126, %v125
    %v128 = vmul.f32 0.5, %v127
    %v129 = vsub.f32 1.5, %v128
    %v130 = vmul.f32 %v125, %v129
    %vm131 = vweird.f32 %v112
    %vm132 = vweird.f32 %v125
    %vm133 = vmor %vm131, %vm132
    %v134 = vsel %vm133, %v125, %v130
    %v135 = vrsqrt.pop %v113
    %v136 = vmul.f32 %v135, %v113
    %v137 = vmul.f32 %v136, %v135
    %v138 = vmul.f32 0.5, %v137
    %v139 = vsub.f32 1.5, %v138
    %v140 = vmul.f32 %v135, %v139
    %vm141 = vweird.f32 %v113
    %vm142 = vweird.f32 %v135
    %vm143 = vmor %vm141, %vm142
    %v144 = vsel %vm143, %v135, %v140
    %v145 = vrsqrt.pop %v114
    %v146 = vmul.f32 %v145, %v114
    %v147 = vmul.f32 %v146, %v145
    %v148 = vmul.f32 0.5, %v147
    %v149 = vsub.f32 1.5, %v148
    %v150 = vmul.f32 %v145, %v149
    %vm151 = vweird.f32 %v114
    %vm152 = vweird.f32 %v145
    %vm153 = vmor %vm151, %vm152
    %v154 = vsel %vm153, %v145, %v150
    %v155 = vmul.f32 %v87, %v124
    %v156 = vmul.f32 %v88, %v134
    %v157 = vmul.f32 %v89, %v144
    %v158 = vmul.f32 %v90, %v154
    %v159 = vperm.slane %v35, 0
    %v160 = vmul.f32 %v155, %v159
    %v161 = vmul.f32 %v156, %v159
    %v162 = vmul.f32 %v157, %v159
    %v163 = vmul.f32 %v158, %v159
    %v164 = vperm.slane %v36, 0
    %v165 = vadd.f32 %v160, %v164
    %v166 = vadd.f32 %v161, %v164
    %v167 = vadd.f32 %v162, %v164
    %v168 = vadd.f32 %v163, %v164
    %v169 = vpack.c.bf16 %v166, %v165
    %v170 = vpack.c.bf16 %v168, %v167
    %v171 = vperm.slane %v39, 0
    %v176 = vunpack.c.l.b16 %v43
    %v177 = vunpack.c.l.b16 %v44
    %v178 = vunpack.c.l.b16 %v45
    %v179 = vunpack.c.l.b16 %v46
    %v180 = vpack.c.b16 %v177, %v176
    %v181 = vpack.c.b16 %v179, %v178
    %v185 = vsel %vm63, %v169, 0
    %v188 = vsel %vm63, %v170, 0
    %190 = vmatpush.bf16.msra.mxu0 0
    %191 = vmatpush.bf16.msra.mxu0 0
    %192 = vmatpush.bf16.msra.mxu0 0
    %193 = vmatpush.bf16.msra.mxu0 0
    %194 = vmatpush.bf16.msra.mxu0 0
    %195 = vmatpush.bf16.msra.mxu0 0
    %196 = vmatpush.bf16.msra.mxu0 %v181
    %197 = vmatpush.bf16.msra.mxu0 %v180
    %198 = vmatmul.bf16.gmra.mxu0 %v185
    %v199 = vpop.f32.mrf.mxu0
    %v200 = vadd.f32 %v171, %v199
    %v201 = vpop.f32.mrf.mxu0
    %v202 = vadd.f32 %v171, %v201
    %203 = vmatmul.bf16.gmra.mxu0 %v188
    %v204 = vpop.f32.mrf.mxu0
    %v205 = vadd.f32 %v171, %v204
    %v206 = vpop.f32.mrf.mxu0
    %v207 = vadd.f32 %v171, %v206
    %208 = vdwg.mxu0
    %v209 = vpack.c.bf16 %v200, %v200
    %v210 = vpack.c.bf16 %v202, %v202
    %v211 = vpack.c.bf16 %v205, %v205
    %v212 = vpack.c.bf16 %v207, %v207
    %v215 = vunpack.c.l.b16 %v209
    %v216 = vunpack.c.l.b16 %v210
    %v217 = vpack.c.b16 %v216, %v215
    %218 = vrot.lane.b32.xlu0 %v217, 96
    %v219 = vpop.permute.xlu0 %218
    %vm220 = vcmask 64512
    %v222 = vsel %vm220, %v217, 0
    %v225 = vsel %vm220, %v219, 0
    %227 = vmatpush.bf16.xpose.msra.mxu0 0
    %228 = vmatpush.bf16.xpose.msra.mxu0 0
    %229 = vmatpush.bf16.xpose.msra.mxu0 0
    %230 = vmatpush.bf16.xpose.msra.mxu0 0
    %231 = vmatpush.bf16.xpose.msra.mxu0 0
    %232 = vmatpush.bf16.xpose.msra.mxu0 0
    %233 = vmatpush.bf16.xpose.msra.mxu0 0
    %234 = vmatpush.bf16.xpose.msra.mxu0 %v225
    %235 = vmatmul.bf16.gmra.mxu0 %v222
    %v236 = vpop.f32.mrf.mxu0
    %v237 = vadd.f32 0.0, %v236
    %v238 = vpop.f32.mrf.mxu0
    %v239 = vadd.f32 0.0, %v238
    %240 = vdwg.mxu0
    %v243 = vunpack.c.l.b16 %v211
    %v244 = vunpack.c.l.b16 %v212
    %v245 = vpack.c.b16 %v244, %v243
    %246 = vrot.lane.b32.xlu0 %v245, 96
    %v247 = vpop.permute.xlu0 %246
    %v249 = vsel %vm220, %v245, 0
    %v252 = vsel %vm220, %v247, 0
    %254 = vmatpush.bf16.xpose.msra.mxu0 0
    %255 = vmatpush.bf16.xpose.msra.mxu0 0
    %256 = vmatpush.bf16.xpose.msra.mxu0 0
    %257 = vmatpush.bf16.xpose.msra.mxu0 0
    %258 = vmatpush.bf16.xpose.msra.mxu0 0
    %259 = vmatpush.bf16.xpose.msra.mxu0 0
    %260 = vmatpush.bf16.xpose.msra.mxu0 0
    %261 = vmatpush.bf16.xpose.msra.mxu0 %v252
    %262 = vmatmul.bf16.gmra.mxu0 %v249
    %v263 = vpop.f32.mrf.mxu0
    %v264 = vadd.f32 0.0, %v263
    %v265 = vpop.f32.mrf.mxu0
    %v266 = vadd.f32 0.0, %v265
    %267 = vdwg.mxu0
    %vm268 = vcmask 130048
    %v269 = vsel %vm268, %v237, -inf
    %270 = vmax.xlane.f32.xlu0 %v269
    %v271 = vpop.xlane.xlu0 %270
    %v272 = vsel %vm268, %v239, -inf
    %273 = vmax.xlane.f32.xlu0 %v272
    %v274 = vpop.xlane.xlu0 %273
    %v275 = vsel %vm268, %v264, -inf
    %276 = vmax.xlane.f32.xlu0 %v275
    %v277 = vpop.xlane.xlu0 %276
    %v278 = vsel %vm268, %v266, -inf
    %279 = vmax.xlane.f32.xlu0 %v278
    %v280 = vpop.xlane.xlu0 %279
    %v281 = vsub.f32 %v237, %v271
    %v282 = vsub.f32 %v239, %v274
    %v283 = vsub.f32 %v264, %v277
    %v284 = vsub.f32 %v266, %v280
    %v285 = vmul.f32 %v281, 1.442695
    %v286 = vpow.pop %v285
    %v287 = vmul.f32 %v282, 1.442695
    %v288 = vpow.pop %v287
    %v289 = vmul.f32 %v283, 1.442695
    %v290 = vpow.pop %v289
    %v291 = vmul.f32 %v284, 1.442695
    %v292 = vpow.pop %v291
    %v293 = vsel %vm268, %v286, 0.0
    %294 = vadd.xlane.f32.xlu0 %v293
    %v295 = vpop.xlane.xlu0 %294
    %v296 = vsel %vm268, %v288, 0.0
    %297 = vadd.xlane.f32.xlu0 %v296
    %v298 = vpop.xlane.xlu0 %297
    %v299 = vsel %vm268, %v290, 0.0
    %300 = vadd.xlane.f32.xlu0 %v299
    %v301 = vpop.xlane.xlu0 %300
    %v302 = vsel %vm268, %v292, 0.0
    %303 = vadd.xlane.f32.xlu0 %v302
    %v304 = vpop.xlane.xlu0 %303
    %v305 = vrcp.pop %v295
    %v306 = vrcp.pop %v298
    %v307 = vrcp.pop %v301
    %v308 = vrcp.pop %v304
    %v309 = vmul.f32 %v286, %v305
    %v310 = vmul.f32 %v288, %v306
    %v311 = vmul.f32 %v290, %v307
    %v312 = vmul.f32 %v292, %v308
    %v313 = vpack.c.bf16 %v309, %v309
    %v314 = vpack.c.bf16 %v310, %v310
    %v315 = vpack.c.bf16 %v311, %v311
    %v316 = vpack.c.bf16 %v312, %v312
    %v319 = vunpack.c.l.b16 %v313
    %v320 = vunpack.c.l.b16 %v314
    %v321 = vpack.c.b16 %v320, %v319
    %322 = vrot.lane.b32.xlu0 %v217, 64
    %v323 = vpop.permute.xlu0 %322
    %v326 = vsel %vm268, %v321, 0
    %328 = vmatpush.bf16.msra.mxu0 0
    %329 = vmatpush.bf16.msra.mxu0 0
    %330 = vmatpush.bf16.msra.mxu0 0
    %331 = vmatpush.bf16.msra.mxu0 0
    %332 = vmatpush.bf16.msra.mxu0 0
    %333 = vmatpush.bf16.msra.mxu0 0
    %334 = vmatpush.bf16.msra.mxu0 0
    %335 = vmatpush.bf16.msra.mxu0 %v323
    %336 = vmatmul.bf16.gmra.mxu0 %v326
    %v337 = vpop.f32.mrf.mxu0
    %v338 = vadd.f32 0.0, %v337
    %v339 = vpop.f32.mrf.mxu0
    %v340 = vadd.f32 0.0, %v339
    %341 = vdwg.mxu0
    %v344 = vunpack.c.l.b16 %v315
    %v345 = vunpack.c.l.b16 %v316
    %v346 = vpack.c.b16 %v345, %v344
    %347 = vrot.lane.b32.xlu0 %v245, 64
    %v348 = vpop.permute.xlu0 %347
    %v351 = vsel %vm268, %v346, 0
    %353 = vmatpush.bf16.msra.mxu0 0
    %354 = vmatpush.bf16.msra.mxu0 0
    %355 = vmatpush.bf16.msra.mxu0 0
    %356 = vmatpush.bf16.msra.mxu0 0
    %357 = vmatpush.bf16.msra.mxu0 0
    %358 = vmatpush.bf16.msra.mxu0 0
    %359 = vmatpush.bf16.msra.mxu0 0
    %360 = vmatpush.bf16.msra.mxu0 %v348
    %361 = vmatmul.bf16.gmra.mxu0 %v351
    %v362 = vpop.f32.mrf.mxu0
    %v363 = vadd.f32 0.0, %v362
    %v364 = vpop.f32.mrf.mxu0
    %v365 = vadd.f32 0.0, %v364
    %366 = vdwg.mxu0
    %367 = vrot.lane.b32.xlu0 %v217, 120
    %v368 = vpop.permute.xlu0 %367
    %369 = vrot.lane.b32.xlu0 %v217, 88
    %v370 = vpop.permute.xlu0 %369
    %v372 = vsel %vm220, %v368, 0
    %v375 = vsel %vm220, %v370, 0
    %377 = vmatpush.bf16.xpose.msra.mxu0 0
    %378 = vmatpush.bf16.xpose.msra.mxu0 0
    %379 = vmatpush.bf16.xpose.msra.mxu0 0
    %380 = vmatpush.bf16.xpose.msra.mxu0 0
    %381 = vmatpush.bf16.xpose.msra.mxu0 0
    %382 = vmatpush.bf16.xpose.msra.mxu0 0
    %383 = vmatpush.bf16.xpose.msra.mxu0 0
    %384 = vmatpush.bf16.xpose.msra.mxu0 %v375
    %385 = vmatmul.bf16.gmra.mxu0 %v372
    %v386 = vpop.f32.mrf.mxu0
    %v387 = vadd.f32 0.0, %v386
    %v388 = vpop.f32.mrf.mxu0
    %v389 = vadd.f32 0.0, %v388
    %390 = vdwg.mxu0
    %391 = vrot.lane.b32.xlu0 %v245, 120
    %v392 = vpop.permute.xlu0 %391
    %393 = vrot.lane.b32.xlu0 %v245, 88
    %v394 = vpop.permute.xlu0 %393
    %v396 = vsel %vm220, %v392, 0
    %v399 = vsel %vm220, %v394, 0
    %401 = vmatpush.bf16.xpose.msra.mxu0 0
    %402 = vmatpush.bf16.xpose.msra.mxu0 0
    %403 = vmatpush.bf16.xpose.msra.mxu0 0
    %404 = vmatpush.bf16.xpose.msra.mxu0 0
    %405 = vmatpush.bf16.xpose.msra.mxu0 0
    %406 = vmatpush.bf16.xpose.msra.mxu0 0
    %407 = vmatpush.bf16.xpose.msra.mxu0 0
    %408 = vmatpush.bf16.xpose.msra.mxu0 %v399
    %409 = vmatmul.bf16.gmra.mxu0 %v396
    %v410 = vpop.f32.mrf.mxu0
    %v411 = vadd.f32 0.0, %v410
    %v412 = vpop.f32.mrf.mxu0
    %v413 = vadd.f32 0.0, %v412
    %414 = vdwg.mxu0
    %v415 = vsel %vm268, %v387, -inf
    %416 = vmax.xlane.f32.xlu0 %v415
    %v417 = vpop.xlane.xlu0 %416
    %v418 = vsel %vm268, %v389, -inf
    %419 = vmax.xlane.f32.xlu0 %v418
    %v420 = vpop.xlane.xlu0 %419
    %v421 = vsel %vm268, %v411, -inf
    %422 = vmax.xlane.f32.xlu0 %v421
    %v423 = vpop.xlane.xlu0 %422
    %v424 = vsel %vm268, %v413, -inf
    %425 = vmax.xlane.f32.xlu0 %v424
    %v426 = vpop.xlane.xlu0 %425
    %v427 = vsub.f32 %v387, %v417
    %v428 = vsub.f32 %v389, %v420
    %v429 = vsub.f32 %v411, %v423
    %v430 = vsub.f32 %v413, %v426
    %v431 = vmul.f32 %v427, 1.442695
    %v432 = vpow.pop %v431
    %v433 = vmul.f32 %v428, 1.442695
    %v434 = vpow.pop %v433
    %v435 = vmul.f32 %v429, 1.442695
    %v436 = vpow.pop %v435
    %v437 = vmul.f32 %v430, 1.442695
    %v438 = vpow.pop %v437
    %v439 = vsel %vm268, %v432, 0.0
    %440 = vadd.xlane.f32.xlu0 %v439
    %v441 = vpop.xlane.xlu0 %440
    %v442 = vsel %vm268, %v434, 0.0
    %443 = vadd.xlane.f32.xlu0 %v442
    %v444 = vpop.xlane.xlu0 %443
    %v445 = vsel %vm268, %v436, 0.0
    %446 = vadd.xlane.f32.xlu0 %v445
    %v447 = vpop.xlane.xlu0 %446
    %v448 = vsel %vm268, %v438, 0.0
    %449 = vadd.xlane.f32.xlu0 %v448
    %v450 = vpop.xlane.xlu0 %449
    %v451 = vrcp.pop %v441
    %v452 = vrcp.pop %v444
    %v453 = vrcp.pop %v447
    %v454 = vrcp.pop %v450
    %v455 = vmul.f32 %v432, %v451
    %v456 = vmul.f32 %v434, %v452
    %v457 = vmul.f32 %v436, %v453
    %v458 = vmul.f32 %v438, %v454
    %v459 = vpack.c.bf16 %v455, %v455
    %v460 = vpack.c.bf16 %v456, %v456
    %v461 = vpack.c.bf16 %v457, %v457
    %v462 = vpack.c.bf16 %v458, %v458
    %v465 = vunpack.c.l.b16 %v459
    %v466 = vunpack.c.l.b16 %v460
    %v467 = vpack.c.b16 %v466, %v465
    %468 = vrot.lane.b32.xlu0 %v217, 56
    %v469 = vpop.permute.xlu0 %468
    %v472 = vsel %vm268, %v467, 0
    %474 = vmatpush.bf16.msra.mxu0 0
    %475 = vmatpush.bf16.msra.mxu0 0
    %476 = vmatpush.bf16.msra.mxu0 0
    %477 = vmatpush.bf16.msra.mxu0 0
    %478 = vmatpush.bf16.msra.mxu0 0
    %479 = vmatpush.bf16.msra.mxu0 0
    %480 = vmatpush.bf16.msra.mxu0 0
    %481 = vmatpush.bf16.msra.mxu0 %v469
    %482 = vmatmul.bf16.gmra.mxu0 %v472
    %v483 = vpop.f32.mrf.mxu0
    %v484 = vadd.f32 0.0, %v483
    %v485 = vpop.f32.mrf.mxu0
    %v486 = vadd.f32 0.0, %v485
    %487 = vdwg.mxu0
    %v490 = vunpack.c.l.b16 %v461
    %v491 = vunpack.c.l.b16 %v462
    %v492 = vpack.c.b16 %v491, %v490
    %493 = vrot.lane.b32.xlu0 %v245, 56
    %v494 = vpop.permute.xlu0 %493
    %v497 = vsel %vm268, %v492, 0
    %499 = vmatpush.bf16.msra.mxu0 0
    %500 = vmatpush.bf16.msra.mxu0 0
    %501 = vmatpush.bf16.msra.mxu0 0
    %502 = vmatpush.bf16.msra.mxu0 0
    %503 = vmatpush.bf16.msra.mxu0 0
    %504 = vmatpush.bf16.msra.mxu0 0
    %505 = vmatpush.bf16.msra.mxu0 0
    %506 = vmatpush.bf16.msra.mxu0 %v494
    %507 = vmatmul.bf16.gmra.mxu0 %v497
    %v508 = vpop.f32.mrf.mxu0
    %v509 = vadd.f32 0.0, %v508
    %v510 = vpop.f32.mrf.mxu0
    %v511 = vadd.f32 0.0, %v510
    %512 = vdwg.mxu0
    %513 = vrot.lane.b32.xlu0 %v217, 112
    %v514 = vpop.permute.xlu0 %513
    %515 = vrot.lane.b32.xlu0 %v217, 80
    %v516 = vpop.permute.xlu0 %515
    %v518 = vsel %vm220, %v514, 0
    %v521 = vsel %vm220, %v516, 0
    %523 = vmatpush.bf16.xpose.msra.mxu0 0
    %524 = vmatpush.bf16.xpose.msra.mxu0 0
    %525 = vmatpush.bf16.xpose.msra.mxu0 0
    %526 = vmatpush.bf16.xpose.msra.mxu0 0
    %527 = vmatpush.bf16.xpose.msra.mxu0 0
    %528 = vmatpush.bf16.xpose.msra.mxu0 0
    %529 = vmatpush.bf16.xpose.msra.mxu0 0
    %530 = vmatpush.bf16.xpose.msra.mxu0 %v521
    %531 = vmatmul.bf16.gmra.mxu0 %v518
    %v532 = vpop.f32.mrf.mxu0
    %v533 = vadd.f32 0.0, %v532
    %v534 = vpop.f32.mrf.mxu0
    %v535 = vadd.f32 0.0, %v534
    %536 = vdwg.mxu0
    %537 = vrot.lane.b32.xlu0 %v245, 112
    %v538 = vpop.permute.xlu0 %537
    %539 = vrot.lane.b32.xlu0 %v245, 80
    %v540 = vpop.permute.xlu0 %539
    %v542 = vsel %vm220, %v538, 0
    %v545 = vsel %vm220, %v540, 0
    %547 = vmatpush.bf16.xpose.msra.mxu0 0
    %548 = vmatpush.bf16.xpose.msra.mxu0 0
    %549 = vmatpush.bf16.xpose.msra.mxu0 0
    %550 = vmatpush.bf16.xpose.msra.mxu0 0
    %551 = vmatpush.bf16.xpose.msra.mxu0 0
    %552 = vmatpush.bf16.xpose.msra.mxu0 0
    %553 = vmatpush.bf16.xpose.msra.mxu0 0
    %554 = vmatpush.bf16.xpose.msra.mxu0 %v545
    %555 = vmatmul.bf16.gmra.mxu0 %v542
    %v556 = vpop.f32.mrf.mxu0
    %v557 = vadd.f32 0.0, %v556
    %v558 = vpop.f32.mrf.mxu0
    %v559 = vadd.f32 0.0, %v558
    %560 = vdwg.mxu0
    %v561 = vsel %vm268, %v533, -inf
    %562 = vmax.xlane.f32.xlu0 %v561
    %v563 = vpop.xlane.xlu0 %562
    %v564 = vsel %vm268, %v535, -inf
    %565 = vmax.xlane.f32.xlu0 %v564
    %v566 = vpop.xlane.xlu0 %565
    %v567 = vsel %vm268, %v557, -inf
    %568 = vmax.xlane.f32.xlu0 %v567
    %v569 = vpop.xlane.xlu0 %568
    %v570 = vsel %vm268, %v559, -inf
    %571 = vmax.xlane.f32.xlu0 %v570
    %v572 = vpop.xlane.xlu0 %571
    %v573 = vsub.f32 %v533, %v563
    %v574 = vsub.f32 %v535, %v566
    %v575 = vsub.f32 %v557, %v569
    %v576 = vsub.f32 %v559, %v572
    %v577 = vmul.f32 %v573, 1.442695
    %v578 = vpow.pop %v577
    %v579 = vmul.f32 %v574, 1.442695
    %v580 = vpow.pop %v579
    %v581 = vmul.f32 %v575, 1.442695
    %v582 = vpow.pop %v581
    %v583 = vmul.f32 %v576, 1.442695
    %v584 = vpow.pop %v583
    %v585 = vsel %vm268, %v578, 0.0
    %586 = vadd.xlane.f32.xlu0 %v585
    %v587 = vpop.xlane.xlu0 %586
    %v588 = vsel %vm268, %v580, 0.0
    %589 = vadd.xlane.f32.xlu0 %v588
    %v590 = vpop.xlane.xlu0 %589
    %v591 = vsel %vm268, %v582, 0.0
    %592 = vadd.xlane.f32.xlu0 %v591
    %v593 = vpop.xlane.xlu0 %592
    %v594 = vsel %vm268, %v584, 0.0
    %595 = vadd.xlane.f32.xlu0 %v594
    %v596 = vpop.xlane.xlu0 %595
    %v597 = vrcp.pop %v587
    %v598 = vrcp.pop %v590
    %v599 = vrcp.pop %v593
    %v600 = vrcp.pop %v596
    %v601 = vmul.f32 %v578, %v597
    %v602 = vmul.f32 %v580, %v598
    %v603 = vmul.f32 %v582, %v599
    %v604 = vmul.f32 %v584, %v600
    %v605 = vpack.c.bf16 %v601, %v601
    %v606 = vpack.c.bf16 %v602, %v602
    %v607 = vpack.c.bf16 %v603, %v603
    %v608 = vpack.c.bf16 %v604, %v604
    %v611 = vunpack.c.l.b16 %v605
    %v612 = vunpack.c.l.b16 %v606
    %v613 = vpack.c.b16 %v612, %v611
    %614 = vrot.lane.b32.xlu0 %v217, 48
    %v615 = vpop.permute.xlu0 %614
    %v618 = vsel %vm268, %v613, 0
    %620 = vmatpush.bf16.msra.mxu0 0
    %621 = vmatpush.bf16.msra.mxu0 0
    %622 = vmatpush.bf16.msra.mxu0 0
    %623 = vmatpush.bf16.msra.mxu0 0
    %624 = vmatpush.bf16.msra.mxu0 0
    %625 = vmatpush.bf16.msra.mxu0 0
    %626 = vmatpush.bf16.msra.mxu0 0
    %627 = vmatpush.bf16.msra.mxu0 %v615
    %628 = vmatmul.bf16.gmra.mxu0 %v618
    %v629 = vpop.f32.mrf.mxu0
    %v630 = vadd.f32 0.0, %v629
    %v631 = vpop.f32.mrf.mxu0
    %v632 = vadd.f32 0.0, %v631
    %633 = vdwg.mxu0
    %v636 = vunpack.c.l.b16 %v607
    %v637 = vunpack.c.l.b16 %v608
    %v638 = vpack.c.b16 %v637, %v636
    %639 = vrot.lane.b32.xlu0 %v245, 48
    %v640 = vpop.permute.xlu0 %639
    %v643 = vsel %vm268, %v638, 0
    %645 = vmatpush.bf16.msra.mxu0 0
    %646 = vmatpush.bf16.msra.mxu0 0
    %647 = vmatpush.bf16.msra.mxu0 0
    %648 = vmatpush.bf16.msra.mxu0 0
    %649 = vmatpush.bf16.msra.mxu0 0
    %650 = vmatpush.bf16.msra.mxu0 0
    %651 = vmatpush.bf16.msra.mxu0 0
    %652 = vmatpush.bf16.msra.mxu0 %v640
    %653 = vmatmul.bf16.gmra.mxu0 %v643
    %v654 = vpop.f32.mrf.mxu0
    %v655 = vadd.f32 0.0, %v654
    %v656 = vpop.f32.mrf.mxu0
    %v657 = vadd.f32 0.0, %v656
    %658 = vdwg.mxu0
    %659 = vrot.lane.b32.xlu0 %v217, 104
    %v660 = vpop.permute.xlu0 %659
    %661 = vrot.lane.b32.xlu0 %v217, 72
    %v662 = vpop.permute.xlu0 %661
    %v664 = vsel %vm220, %v660, 0
    %v667 = vsel %vm220, %v662, 0
    %669 = vmatpush.bf16.xpose.msra.mxu0 0
    %670 = vmatpush.bf16.xpose.msra.mxu0 0
    %671 = vmatpush.bf16.xpose.msra.mxu0 0
    %672 = vmatpush.bf16.xpose.msra.mxu0 0
    %673 = vmatpush.bf16.xpose.msra.mxu0 0
    %674 = vmatpush.bf16.xpose.msra.mxu0 0
    %675 = vmatpush.bf16.xpose.msra.mxu0 0
    %676 = vmatpush.bf16.xpose.msra.mxu0 %v667
    %677 = vmatmul.bf16.gmra.mxu0 %v664
    %v678 = vpop.f32.mrf.mxu0
    %v679 = vadd.f32 0.0, %v678
    %v680 = vpop.f32.mrf.mxu0
    %v681 = vadd.f32 0.0, %v680
    %682 = vdwg.mxu0
    %683 = vrot.lane.b32.xlu0 %v245, 104
    %v684 = vpop.permute.xlu0 %683
    %685 = vrot.lane.b32.xlu0 %v245, 72
    %v686 = vpop.permute.xlu0 %685
    %v688 = vsel %vm220, %v684, 0
    %v691 = vsel %vm220, %v686, 0
    %693 = vmatpush.bf16.xpose.msra.mxu0 0
    %694 = vmatpush.bf16.xpose.msra.mxu0 0
    %695 = vmatpush.bf16.xpose.msra.mxu0 0
    %696 = vmatpush.bf16.xpose.msra.mxu0 0
    %697 = vmatpush.bf16.xpose.msra.mxu0 0
    %698 = vmatpush.bf16.xpose.msra.mxu0 0
    %699 = vmatpush.bf16.xpose.msra.mxu0 0
    %700 = vmatpush.bf16.xpose.msra.mxu0 %v691
    %701 = vmatmul.bf16.gmra.mxu0 %v688
    %v702 = vpop.f32.mrf.mxu0
    %v703 = vadd.f32 0.0, %v702
    %v704 = vpop.f32.mrf.mxu0
    %v705 = vadd.f32 0.0, %v704
    %706 = vdwg.mxu0
    %v707 = vsel %vm268, %v679, -inf
    %708 = vmax.xlane.f32.xlu0 %v707
    %v709 = vpop.xlane.xlu0 %708
    %v710 = vsel %vm268, %v681, -inf
    %711 = vmax.xlane.f32.xlu0 %v710
    %v712 = vpop.xlane.xlu0 %711
    %v713 = vsel %vm268, %v703, -inf
    %714 = vmax.xlane.f32.xlu0 %v713
    %v715 = vpop.xlane.xlu0 %714
    %v716 = vsel %vm268, %v705, -inf
    %717 = vmax.xlane.f32.xlu0 %v716
    %v718 = vpop.xlane.xlu0 %717
    %v719 = vsub.f32 %v679, %v709
    %v720 = vsub.f32 %v681, %v712
    %v721 = vsub.f32 %v703, %v715
    %v722 = vsub.f32 %v705, %v718
    %v723 = vmul.f32 %v719, 1.442695
    %v724 = vpow.pop %v723
    %v725 = vmul.f32 %v720, 1.442695
    %v726 = vpow.pop %v725
    %v727 = vmul.f32 %v721, 1.442695
    %v728 = vpow.pop %v727
    %v729 = vmul.f32 %v722, 1.442695
    %v730 = vpow.pop %v729
    %v731 = vsel %vm268, %v724, 0.0
    %732 = vadd.xlane.f32.xlu0 %v731
    %v733 = vpop.xlane.xlu0 %732
    %v734 = vsel %vm268, %v726, 0.0
    %735 = vadd.xlane.f32.xlu0 %v734
    %v736 = vpop.xlane.xlu0 %735
    %v737 = vsel %vm268, %v728, 0.0
    %738 = vadd.xlane.f32.xlu0 %v737
    %v739 = vpop.xlane.xlu0 %738
    %v740 = vsel %vm268, %v730, 0.0
    %741 = vadd.xlane.f32.xlu0 %v740
    %v742 = vpop.xlane.xlu0 %741
    %v743 = vrcp.pop %v733
    %v744 = vrcp.pop %v736
    %v745 = vrcp.pop %v739
    %v746 = vrcp.pop %v742
    %v747 = vmul.f32 %v724, %v743
    %v748 = vmul.f32 %v726, %v744
    %v749 = vmul.f32 %v728, %v745
    %v750 = vmul.f32 %v730, %v746
    %v751 = vpack.c.bf16 %v747, %v747
    %v752 = vpack.c.bf16 %v748, %v748
    %v753 = vpack.c.bf16 %v749, %v749
    %v754 = vpack.c.bf16 %v750, %v750
    %v757 = vunpack.c.l.b16 %v751
    %v758 = vunpack.c.l.b16 %v752
    %v759 = vpack.c.b16 %v758, %v757
    %760 = vrot.lane.b32.xlu0 %v217, 40
    %v761 = vpop.permute.xlu0 %760
    %v764 = vsel %vm268, %v759, 0
    %766 = vmatpush.bf16.msra.mxu0 0
    %767 = vmatpush.bf16.msra.mxu0 0
    %768 = vmatpush.bf16.msra.mxu0 0
    %769 = vmatpush.bf16.msra.mxu0 0
    %770 = vmatpush.bf16.msra.mxu0 0
    %771 = vmatpush.bf16.msra.mxu0 0
    %772 = vmatpush.bf16.msra.mxu0 0
    %773 = vmatpush.bf16.msra.mxu0 %v761
    %774 = vmatmul.bf16.gmra.mxu0 %v764
    %v775 = vpop.f32.mrf.mxu0
    %v776 = vadd.f32 0.0, %v775
    %v777 = vpop.f32.mrf.mxu0
    %v778 = vadd.f32 0.0, %v777
    %779 = vdwg.mxu0
    %v782 = vunpack.c.l.b16 %v753
    %v783 = vunpack.c.l.b16 %v754
    %v784 = vpack.c.b16 %v783, %v782
    %785 = vrot.lane.b32.xlu0 %v245, 40
    %v786 = vpop.permute.xlu0 %785
    %v789 = vsel %vm268, %v784, 0
    %791 = vmatpush.bf16.msra.mxu0 0
    %792 = vmatpush.bf16.msra.mxu0 0
    %793 = vmatpush.bf16.msra.mxu0 0
    %794 = vmatpush.bf16.msra.mxu0 0
    %795 = vmatpush.bf16.msra.mxu0 0
    %796 = vmatpush.bf16.msra.mxu0 0
    %797 = vmatpush.bf16.msra.mxu0 0
    %798 = vmatpush.bf16.msra.mxu0 %v786
    %799 = vmatmul.bf16.gmra.mxu0 %v789
    %v800 = vpop.f32.mrf.mxu0
    %v801 = vadd.f32 0.0, %v800
    %v802 = vpop.f32.mrf.mxu0
    %v803 = vadd.f32 0.0, %v802
    %804 = vdwg.mxu0
    %809 = vrot.lane.b32.xlu0 %v484, 8
    %v810 = vpop.permute.xlu0 %809
    %811 = vrot.lane.b32.xlu0 %v486, 8
    %v812 = vpop.permute.xlu0 %811
    %813 = vrot.lane.b32.xlu0 %v509, 8
    %v814 = vpop.permute.xlu0 %813
    %815 = vrot.lane.b32.xlu0 %v511, 8
    %v816 = vpop.permute.xlu0 %815
    %825 = vrot.lane.b32.xlu0 %v630, 16
    %v826 = vpop.permute.xlu0 %825
    %827 = vrot.lane.b32.xlu0 %v632, 16
    %v828 = vpop.permute.xlu0 %827
    %829 = vrot.lane.b32.xlu0 %v655, 16
    %v830 = vpop.permute.xlu0 %829
    %831 = vrot.lane.b32.xlu0 %v657, 16
    %v832 = vpop.permute.xlu0 %831
    %841 = vrot.lane.b32.xlu0 %v776, 24
    %v842 = vpop.permute.xlu0 %841
    %843 = vrot.lane.b32.xlu0 %v778, 24
    %v844 = vpop.permute.xlu0 %843
    %845 = vrot.lane.b32.xlu0 %v801, 24
    %v846 = vpop.permute.xlu0 %845
    %847 = vrot.lane.b32.xlu0 %v803, 24
    %v848 = vpop.permute.xlu0 %847
    %v853 = vsel %vm220, %v338, %v810
    %v854 = vsel %vm220, %v340, %v812
    %v855 = vsel %vm220, %v363, %v814
    %v856 = vsel %vm220, %v365, %v816
    %v857 = vsel %vm268, %v853, %v826
    %v858 = vsel %vm268, %v854, %v828
    %v859 = vsel %vm268, %v855, %v830
    %v860 = vsel %vm268, %v856, %v832
    %vm861 = vcmask 195584
    %v862 = vsel %vm861, %v857, %v842
    %v863 = vsel %vm861, %v858, %v844
    %v864 = vsel %vm861, %v859, %v846
    %v865 = vsel %vm861, %v860, %v848
    %v866 = vpack.c.bf16 %v863, %v862
    %v867 = vpack.c.bf16 %v865, %v864
    %v868 = vperm.slane %v40, 0
    %v873 = vunpack.c.l.b16 %v47
    %v874 = vunpack.c.l.b16 %v48
    %v875 = vunpack.c.l.b16 %v49
    %v876 = vunpack.c.l.b16 %v50
    %v877 = vpack.c.b16 %v874, %v873
    %v878 = vpack.c.b16 %v876, %v875
    %v882 = vsel %vm63, %v866, 0
    %v885 = vsel %vm63, %v867, 0
    %887 = vmatpush.bf16.msra.mxu0 0
    %888 = vmatpush.bf16.msra.mxu0 0
    %889 = vmatpush.bf16.msra.mxu0 0
    %890 = vmatpush.bf16.msra.mxu0 0
    %891 = vmatpush.bf16.msra.mxu0 0
    %892 = vmatpush.bf16.msra.mxu0 0
    %893 = vmatpush.bf16.msra.mxu0 %v878
    %894 = vmatpush.bf16.msra.mxu0 %v877
    %895 = vmatmul.bf16.gmra.mxu0 %v882
    %v896 = vpop.f32.mrf.mxu0
    %v897 = vadd.f32 %v868, %v896
    %v898 = vpop.f32.mrf.mxu0
    %v899 = vadd.f32 %v868, %v898
    %900 = vmatmul.bf16.gmra.mxu0 %v885
    %v901 = vpop.f32.mrf.mxu0
    %v902 = vadd.f32 %v868, %v901
    %v903 = vpop.f32.mrf.mxu0
    %v904 = vadd.f32 %v868, %v903
    %905 = vdwg.mxu0
    %v906 = vadd.f32 %v31, %v897
    %v907 = vadd.f32 %v32, %v899
    %v908 = vadd.f32 %v33, %v902
    %v909 = vadd.f32 %v34, %v904
    %v910 = vsel %vm63, %v906, 0.0
    %911 = vadd.xlane.f32.xlu0 %v910
    %v912 = vpop.xlane.xlu0 %911
    %v913 = vsel %vm63, %v907, 0.0
    %914 = vadd.xlane.f32.xlu0 %v913
    %v915 = vpop.xlane.xlu0 %914
    %v916 = vsel %vm63, %v908, 0.0
    %917 = vadd.xlane.f32.xlu0 %v916
    %v918 = vpop.xlane.xlu0 %917
    %v919 = vsel %vm63, %v909, 0.0
    %920 = vadd.xlane.f32.xlu0 %v919
    %v921 = vpop.xlane.xlu0 %920
    %v922 = vmul.f32 %v912, %v82
    %v923 = vmul.f32 %v915, %v82
    %v924 = vmul.f32 %v918, %v82
    %v925 = vmul.f32 %v921, %v82
    %v926 = vsub.f32 %v906, %v922
    %v927 = vsub.f32 %v907, %v923
    %v928 = vsub.f32 %v908, %v924
    %v929 = vsub.f32 %v909, %v925
    %v930 = vmul.f32 %v926, %v926
    %v931 = vmul.f32 %v927, %v927
    %v932 = vmul.f32 %v928, %v928
    %v933 = vmul.f32 %v929, %v929
    %v934 = vsel %vm63, %v930, 0.0
    %935 = vadd.xlane.f32.xlu0 %v934
    %v936 = vpop.xlane.xlu0 %935
    %v937 = vsel %vm63, %v931, 0.0
    %938 = vadd.xlane.f32.xlu0 %v937
    %v939 = vpop.xlane.xlu0 %938
    %v940 = vsel %vm63, %v932, 0.0
    %941 = vadd.xlane.f32.xlu0 %v940
    %v942 = vpop.xlane.xlu0 %941
    %v943 = vsel %vm63, %v933, 0.0
    %944 = vadd.xlane.f32.xlu0 %v943
    %v945 = vpop.xlane.xlu0 %944
    %v946 = vmul.f32 %v936, %v82
    %v947 = vmul.f32 %v939, %v82
    %v948 = vmul.f32 %v942, %v82
    %v949 = vmul.f32 %v945, %v82
    %v950 = vadd.f32 %v946, 1e-06
    %v951 = vadd.f32 %v947, 1e-06
    %v952 = vadd.f32 %v948, 1e-06
    %v953 = vadd.f32 %v949, 1e-06
    %v954 = vrsqrt.pop %v950
    %v955 = vmul.f32 %v954, %v950
    %v956 = vmul.f32 %v955, %v954
    %v957 = vmul.f32 0.5, %v956
    %v958 = vsub.f32 1.5, %v957
    %v959 = vmul.f32 %v954, %v958
    %vm960 = vweird.f32 %v950
    %vm961 = vweird.f32 %v954
    %vm962 = vmor %vm960, %vm961
    %v963 = vsel %vm962, %v954, %v959
    %v964 = vrsqrt.pop %v951
    %v965 = vmul.f32 %v964, %v951
    %v966 = vmul.f32 %v965, %v964
    %v967 = vmul.f32 0.5, %v966
    %v968 = vsub.f32 1.5, %v967
    %v969 = vmul.f32 %v964, %v968
    %vm970 = vweird.f32 %v951
    %vm971 = vweird.f32 %v964
    %vm972 = vmor %vm970, %vm971
    %v973 = vsel %vm972, %v964, %v969
    %v974 = vrsqrt.pop %v952
    %v975 = vmul.f32 %v974, %v952
    %v976 = vmul.f32 %v975, %v974
    %v977 = vmul.f32 0.5, %v976
    %v978 = vsub.f32 1.5, %v977
    %v979 = vmul.f32 %v974, %v978
    %vm980 = vweird.f32 %v952
    %vm981 = vweird.f32 %v974
    %vm982 = vmor %vm980, %vm981
    %v983 = vsel %vm982, %v974, %v979
    %v984 = vrsqrt.pop %v953
    %v985 = vmul.f32 %v984, %v953
    %v986 = vmul.f32 %v985, %v984
    %v987 = vmul.f32 0.5, %v986
    %v988 = vsub.f32 1.5, %v987
    %v989 = vmul.f32 %v984, %v988
    %vm990 = vweird.f32 %v953
    %vm991 = vweird.f32 %v984
    %vm992 = vmor %vm990, %vm991
    %v993 = vsel %vm992, %v984, %v989
    %v994 = vmul.f32 %v926, %v963
    %v995 = vmul.f32 %v927, %v973
    %v996 = vmul.f32 %v928, %v983
    %v997 = vmul.f32 %v929, %v993
    %v998 = vperm.slane %v37, 0
    %v999 = vmul.f32 %v994, %v998
    %v1000 = vmul.f32 %v995, %v998
    %v1001 = vmul.f32 %v996, %v998
    %v1002 = vmul.f32 %v997, %v998
    %v1003 = vperm.slane %v38, 0
    %v1004 = vadd.f32 %v999, %v1003
    %v1005 = vadd.f32 %v1000, %v1003
    %v1006 = vadd.f32 %v1001, %v1003
    %v1007 = vadd.f32 %v1002, %v1003
    %v1008 = vpack.c.bf16 %v1005, %v1004
    %v1009 = vpack.c.bf16 %v1007, %v1006
    %v1010 = vperm.slane %v41, 0
    %v1015 = vunpack.c.l.b16 %v51
    %v1016 = vunpack.c.l.b16 %v52
    %v1017 = vunpack.c.l.b16 %v53
    %v1018 = vunpack.c.l.b16 %v54
    %v1019 = vpack.c.b16 %v1016, %v1015
    %v1020 = vpack.c.b16 %v1018, %v1017
    %v1024 = vsel %vm63, %v1008, 0
    %v1027 = vsel %vm63, %v1009, 0
    %1029 = vmatpush.bf16.msra.mxu0 0
    %1030 = vmatpush.bf16.msra.mxu0 0
    %1031 = vmatpush.bf16.msra.mxu0 0
    %1032 = vmatpush.bf16.msra.mxu0 0
    %1033 = vmatpush.bf16.msra.mxu0 0
    %1034 = vmatpush.bf16.msra.mxu0 0
    %1035 = vmatpush.bf16.msra.mxu0 %v1020
    %1036 = vmatpush.bf16.msra.mxu0 %v1019
    %1037 = vmatmul.bf16.gmra.mxu0 %v1024
    %v1038 = vpop.f32.mrf.mxu0
    %v1039 = vadd.f32 %v1010, %v1038
    %v1040 = vpop.f32.mrf.mxu0
    %v1041 = vadd.f32 %v1010, %v1040
    %1042 = vmatmul.bf16.gmra.mxu0 %v1027
    %v1043 = vpop.f32.mrf.mxu0
    %v1044 = vadd.f32 %v1010, %v1043
    %v1045 = vpop.f32.mrf.mxu0
    %v1046 = vadd.f32 %v1010, %v1045
    %1047 = vdwg.mxu0
    %v1048 = vmul.f32 %v1039, 0.5
    %v1049 = vmul.f32 %v1041, 0.5
    %v1050 = vmul.f32 %v1044, 0.5
    %v1051 = vmul.f32 %v1046, 0.5
    %v1052 = vmul.f32 %v1039, 0.044715
    %v1053 = vmul.f32 %v1041, 0.044715
    %v1054 = vmul.f32 %v1044, 0.044715
    %v1055 = vmul.f32 %v1046, 0.044715
    %v1056 = vmul.f32 %v1052, %v1039
    %v1057 = vmul.f32 %v1053, %v1041
    %v1058 = vmul.f32 %v1054, %v1044
    %v1059 = vmul.f32 %v1055, %v1046
    %v1060 = vmul.f32 %v1056, %v1039
    %v1061 = vmul.f32 %v1057, %v1041
    %v1062 = vmul.f32 %v1058, %v1044
    %v1063 = vmul.f32 %v1059, %v1046
    %v1064 = vadd.f32 %v1039, %v1060
    %v1065 = vadd.f32 %v1041, %v1061
    %v1066 = vadd.f32 %v1044, %v1062
    %v1067 = vadd.f32 %v1046, %v1063
    %v1068 = vmul.f32 %v1064, 0.7978846
    %v1069 = vmul.f32 %v1065, 0.7978846
    %v1070 = vmul.f32 %v1066, 0.7978846
    %v1071 = vmul.f32 %v1067, 0.7978846
    %v1072 = vtanh.pop %v1068
    %v1073 = vtanh.pop %v1069
    %v1074 = vtanh.pop %v1070
    %v1075 = vtanh.pop %v1071
    %v1076 = vadd.f32 %v1072, 1.0
    %v1077 = vadd.f32 %v1073, 1.0
    %v1078 = vadd.f32 %v1074, 1.0
    %v1079 = vadd.f32 %v1075, 1.0
    %v1080 = vmul.f32 %v1048, %v1076
    %v1081 = vmul.f32 %v1049, %v1077
    %v1082 = vmul.f32 %v1050, %v1078
    %v1083 = vmul.f32 %v1051, %v1079
    %v1084 = vpack.c.bf16 %v1081, %v1080
    %v1085 = vpack.c.bf16 %v1083, %v1082
    %v1086 = vperm.slane %v42, 0
    %v1095 = vunpack.c.l.b16 %v55
    %v1096 = vunpack.c.l.b16 %v56
    %v1097 = vunpack.c.l.b16 %v57
    %v1098 = vunpack.c.l.b16 %v58
    %v1099 = vunpack.c.l.b16 %v59
    %v1100 = vunpack.c.l.b16 %v60
    %v1101 = vunpack.c.l.b16 %v61
    %v1102 = vunpack.c.l.b16 %v62
    %v1103 = vpack.c.b16 %v1096, %v1095
    %v1104 = vpack.c.b16 %v1098, %v1097
    %v1105 = vpack.c.b16 %v1100, %v1099
    %v1106 = vpack.c.b16 %v1102, %v1101
    %vm1111 = vcmask 523264
    %v1113 = vsel %vm1111, %v1084, 0
    %v1116 = vsel %vm1111, %v1085, 0
    %1118 = vmatpush.bf16.msra.mxu0 0
    %1119 = vmatpush.bf16.msra.mxu0 0
    %1120 = vmatpush.bf16.msra.mxu0 0
    %1121 = vmatpush.bf16.msra.mxu0 0
    %1122 = vmatpush.bf16.msra.mxu0 %v1106
    %1123 = vmatpush.bf16.msra.mxu0 %v1105
    %1124 = vmatpush.bf16.msra.mxu0 %v1104
    %1125 = vmatpush.bf16.msra.mxu0 %v1103
    %1126 = vmatmul.bf16.gmra.mxu0 %v1113
    %v1127 = vpop.f32.mrf.mxu0
    %v1128 = vadd.f32 %v1086, %v1127
    %v1129 = vpop.f32.mrf.mxu0
    %v1130 = vadd.f32 %v1086, %v1129
    %1131 = vmatmul.bf16.gmra.mxu0 %v1116
    %v1132 = vpop.f32.mrf.mxu0
    %v1133 = vadd.f32 %v1086, %v1132
    %v1134 = vpop.f32.mrf.mxu0
    %v1135 = vadd.f32 %v1086, %v1134
    %1136 = vdwg.mxu0
    %v1137 = vadd.f32 %v906, %v1128
    %v1138 = vadd.f32 %v907, %v1130
    %v1139 = vadd.f32 %v908, %v1133
    %v1140 = vadd.f32 %v909, %v1135
    %1141 = vst.msk [vmem:[%s3] sm:$0xff] %vm63, %v1137
    %1142 = vst.msk [vmem:[%s3 + $0x8] sm:$0xff] %vm63, %v1138
    %1143 = vst.msk [vmem:[%s3 + $0x10] sm:$0xff] %vm63, %v1139
    %1144 = vst.msk [vmem:[%s3 + $0x18] sm:$0xff] %vm63, %v1140
    // Predicated region
    $region18: #{encoder1d_block.1} parent=1 // pred_check
      _
    $region19: #{encoder1d_block.1} parent=1 // pred_check_branch
      %1146 = sbr.rel (0) target = $region21
    $region20: #{encoder1d_block.1} parent=1 // pred_region
      _
    $region21: #{encoder1d_block.1} parent=1 // pred_fallthru
      _
    // Predicated region
    $region22: #{encoder1d_block.1} parent=1 // pred_check
      _
    $region23: #{encoder1d_block.1} parent=1 // pred_check_branch
      %1148 = sbr.rel (0) target = $region25
    $region24: #{encoder1d_block.1} parent=1 // pred_region
      _
    $region25: #{encoder1d_block.1} parent=1 // pred_fallthru
      _
    %1149 = vsyncpa [#allocation3], 1

</llo_original>
